<compile_context>
chip_gen: v5e
topology: v5e:2x2
jax: 0.10.0
libtpu: 0.0.40
codegen_flags: <defaults>
</compile_context>

<pallas_src>
import functools

import jax
import jax.numpy as jnp
from jax.experimental import pallas as pl
from jax.experimental.pallas import tpu as pltpu


_LANE = 128         # lane width: output-pixel tile granularity
_SUBLANE = 8        # f32 sublane granularity: pad C_out to this (not 128)
_TILE_M_MAX = 1024  # output pixels per grid step (review: 256 -> 1024)


def _round_up(x, m):
    return ((x + m - 1) // m) * m


def _conv_mm_kernel(p_ref, w_ref, o_ref):
    # p_ref: (1, KC, TILE_M)        bf16 patch columns (output pixels on lanes)
    # w_ref: (C_OUT_PAD, KC)        bf16, constant index_map -> VMEM-resident
    # o_ref: (1, C_OUT_PAD, TILE_M) f32, lane-dense store of real channels only
    o_ref[0] = jnp.dot(w_ref[...], p_ref[0], preferred_element_type=jnp.float32)


def prepare_conv_weight(weight, compute_dtype=jnp.bfloat16):
    """One-time parameter prep (hoisted out of the per-call forward path).

    (C_out, C_in, K, K) -> (round_up(C_out, 8), C_in*K*K); row = co, column
    order (ci, dy, dx) matches the patch-matrix row order below. Zero-padded
    rows keep the matmul exact (padded output channels are exactly zero).
    """
    c_out, c_in, k, k2 = weight.shape
    assert k == k2, "square kernels only"
    w_mat = weight.reshape(c_out, c_in * k * k)
    c_out_pad = _round_up(c_out, _SUBLANE)
    if c_out_pad != c_out:
        w_mat = jnp.pad(w_mat, ((0, c_out_pad - c_out), (0, 0)))
    return w_mat.astype(compute_dtype)


def _patch_columns(x, k, stride, padding):
    """(B, C, H, W) -> (B, C*K*K, OH*OW). Pure layout ops, zero FLOPs.

    KC-axis order is (ci, dy, dx); column index m = oy*OW + ox.
    """
    b, c, h, w = x.shape
    xp = jnp.pad(x, ((0, 0), (0, 0), (padding, padding), (padding, padding)))
    hp, wp = h + 2 * padding, w + 2 * padding
    oh = (hp - k) // stride + 1
    ow = (wp - k) // stride + 1
    cols = []
    for dy in range(k):
        for dx in range(k):
            cols.append(
                xp[:, :, dy:dy + (oh - 1) * stride + 1:stride,
                         dx:dx + (ow - 1) * stride + 1:stride])   # (B, C, OH, OW)
    p = jnp.stack(cols, axis=2)                   # (B, C, K*K, OH, OW)
    return p.reshape(b, c * k * k, oh * ow), oh, ow


@functools.partial(
    jax.jit, static_argnames=("kernel_size", "stride", "padding", "out_channels"))
def conv2d_forward(x, w_mat, *, kernel_size, stride, padding, out_channels):
    """Equivalent of F.conv2d(x, weight, stride=stride, padding=padding), bias=False."""
    b, c, h, w = x.shape
    k = kernel_size
    kc = c * k * k
    c_out_pad = w_mat.shape[0]
    compute_dtype = w_mat.dtype

    patches, oh, ow = _patch_columns(x.astype(compute_dtype), k, stride, padding)
    ohw = oh * ow
    tile_m = min(_TILE_M_MAX, _round_up(ohw, _LANE))
    num_m_tiles = pl.cdiv(ohw, tile_m)
    ohw_pad = num_m_tiles * tile_m
    if ohw_pad != ohw:
        patches = jnp.pad(patches, ((0, 0), (0, 0), (0, ohw_pad - ohw)))

    itemsize = jnp.dtype(compute_dtype).itemsize
    cost = pl.CostEstimate(
        flops=2 * b * c_out_pad * kc * ohw_pad,
        transcendentals=0,
        bytes_accessed=itemsize * (b * kc * ohw_pad + c_out_pad * kc)
        + 4 * b * c_out_pad * ohw_pad,
    )

    out = pl.pallas_call(
        _conv_mm_kernel,
        out_shape=jax.ShapeDtypeStruct((b, c_out_pad, ohw_pad), jnp.float32),
        grid=(b, num_m_tiles),
        in_specs=[
            # streamed patch columns, double-buffered by the BlockSpec pipeline
            pl.BlockSpec((1, kc, tile_m), lambda i, j: (i, 0, j)),
            # weight matrix: constant index_map -> DMA'd once, kept in VMEM
            pl.BlockSpec((c_out_pad, kc), lambda i, j: (0, 0)),
        ],
        out_specs=pl.BlockSpec((1, c_out_pad, tile_m), lambda i, j: (i, 0, j)),
        compiler_params=pltpu.CompilerParams(
            dimension_semantics=("parallel", "parallel"),
            # allow XLA to fuse the layout-only patch producer into input 0
            # instead of materializing the K^2-sized slab in HBM
            allow_input_fusion=[True, False],
        ),
        cost_estimate=cost,
    )(patches, w_mat)

    # (B, C_out_pad, OH*OW) -> NCHW. Slices are no-ops when no padding was
    # added (e.g. the stride=1 "same" config), so no extra HBM pass then.
    out = out[:, :out_channels, :ohw].reshape(b, out_channels, oh, ow)
    return out


if __name__ == "__main__":
    key = jax.random.PRNGKey(0)
    kx, kw = jax.random.split(key)

    B, C_in, H, W = 2, 4, 16, 16
    C_out, K = 8, 3

    x = jax.random.normal(kx, (B, C_in, H, W), jnp.float32)
    # PyTorch Conv2d init in the module: U(-sf, sf), sf = 1/sqrt(C_in*K*K)
    sf = 1.0 / (C_in * K * K) ** 0.5
    weight = jax.random.uniform(kw, (C_out, C_in, K, K), jnp.float32, -sf, sf)

    w_mat = prepare_conv_weight(weight)  # hoisted out of the forward path

    # reference uses the same bf16 input rounding as the kernel's MXU path,
    # with exact (HIGHEST) accumulation -> tight comparison
    x_r = x.astype(jnp.bfloat16).astype(jnp.float32)
    w_r = weight.astype(jnp.bfloat16).astype(jnp.float32)

    # config 1: stride=1, padding=1 ("same"-style conv)
    out1 = conv2d_forward(x, w_mat, kernel_size=K, stride=1, padding=1,
                          out_channels=C_out)
    out1 = jax.block_until_ready(out1)
    ref1 = jax.lax.conv_general_dilated(
        x_r, w_r, window_strides=(1, 1), padding=[(1, 1), (1, 1)],
        dimension_numbers=("NCHW", "OIHW", "NCHW"),
        precision=jax.lax.Precision.HIGHEST)
    assert out1.shape == ref1.shape == (B, C_out, H, W)
    assert jnp.allclose(out1, ref1, atol=1e-4, rtol=1e-4)

    # config 2: stride=2, padding=0 (checks stride/padding handling)
    out2 = conv2d_forward(x, w_mat, kernel_size=K, stride=2, padding=0,
                          out_channels=C_out)
    out2 = jax.block_until_ready(out2)
    ref2 = jax.lax.conv_general_dilated(
        x_r, w_r, window_strides=(2, 2), padding=[(0, 0), (0, 0)],
        dimension_numbers=("NCHW", "OIHW", "NCHW"),
        precision=jax.lax.Precision.HIGHEST)
    assert out2.shape == ref2.shape == (B, C_out, 7, 7)
    assert jnp.allclose(out2, ref2, atol=1e-4, rtol=1e-4)

    print("KERNEL_OK")
</pallas_src>

<mosaic_0001>
module attributes {stable_mosaic.version = 11 : i64} {
  func.func @_conv_mm_kernel(%arg0: i32, %arg1: i32, %arg2: memref<1x36x256xbf16, #tpu.memory_space<vmem>>, %arg3: memref<8x36xbf16, #tpu.memory_space<vmem>>, %arg4: memref<1x8x256xf32, #tpu.memory_space<vmem>>) attributes {dimension_semantics = [#tpu.dimension_semantics<parallel>, #tpu.dimension_semantics<parallel>], iteration_bounds = array<i64: 2, 1>, scalar_prefetch = 0 : i64, scratch_operands = 0 : i64, tpu.core_type = #tpu.core_type<tc>, window_params = [{transform_indices = @transform_0, window_bounds = array<i64: 1, 36, 256>}, {pipeline_mode = #tpu.pipeline_mode<synchronous>, transform_indices = @transform_1, window_bounds = array<i64: 8, 36>}, {transform_indices = @transform_2, window_bounds = array<i64: 1, 8, 256>}]} {
    %c0 = arith.constant 0 : index
    %c0_0 = arith.constant 0 : index
    %0 = vector.load %arg3[%c0, %c0_0] : memref<8x36xbf16, #tpu.memory_space<vmem>>, vector<8x36xbf16>
    %c0_1 = arith.constant 0 : index
    %c0_2 = arith.constant 0 : index
    %c0_3 = arith.constant 0 : index
    %1 = vector.load %arg2[%c0_1, %c0_2, %c0_3] : memref<1x36x256xbf16, #tpu.memory_space<vmem>>, vector<1x36x256xbf16>
    %2 = vector.shape_cast %1 : vector<1x36x256xbf16> to vector<36x256xbf16>
    %cst = arith.constant dense<0.000000e+00> : vector<8x256xf32>
    %3 = tpu.matmul %0, %2, %cst {dimension_numbers = #tpu.dot_dimension_numbers<[1], [0], [0], [1], [0, 0, 1, 1], [], []>} : vector<8x36xbf16>, vector<36x256xbf16>, vector<8x256xf32> -> vector<8x256xf32>
    %c0_4 = arith.constant 0 : index
    %c0_5 = arith.constant 0 : index
    %c0_6 = arith.constant 0 : index
    %4 = vector.load %arg4[%c0_4, %c0_5, %c0_6] : memref<1x8x256xf32, #tpu.memory_space<vmem>>, vector<1x8x256xf32>
    %5 = vector.shape_cast %4 : vector<1x8x256xf32> to vector<8x256xf32>
    %6 = vector.shape_cast %3 : vector<8x256xf32> to vector<1x8x256xf32>
    tpu.vector_store %arg4[%c0_4, %c0_5, %c0_6], %6 {strides = array<i32>} : memref<1x8x256xf32, #tpu.memory_space<vmem>>, vector<1x8x256xf32>,
    return
  }
  func.func @transform_0(%arg0: i32, %arg1: i32) -> (i32, i32, i32) {
    %c0_i32 = arith.constant 0 : i32
    %c0_i32_0 = arith.constant 0 : i32
    return %arg0, %c0_i32, %arg1 : i32, i32, i32
  }
  func.func @transform_1(%arg0: i32, %arg1: i32) -> (i32, i32) {
    %c0_i32 = arith.constant 0 : i32
    %c0_i32_0 = arith.constant 0 : i32
    %c0_i32_1 = arith.constant 0 : i32
    return %c0_i32, %c0_i32_0 : i32, i32
  }
  func.func @transform_2(%arg0: i32, %arg1: i32) -> (i32, i32, i32) {
    %c0_i32 = arith.constant 0 : i32
    %c0_i32_0 = arith.constant 0 : i32
    return %arg0, %c0_i32, %arg1 : i32, i32, i32
  }
}

</mosaic_0001>

<llo_original>
// kernel: conv2d_forward.1
$region0: #{conv2d_forward.1}
  #allocation0 [shape = 'u32[]', space=smem, size = 0x4, offset = 0x4, fixed_abs, tag = 'smem constant byte address 0x4 - core index']
  #allocation1 [shape = 'u32[72,128]{1,0:T(1,128)}', space=vmem, size = 0x9000, scoped, tag = 'internal scratch']
  %s0 = inlined_call_operand.vmem [shape: bf16[2,36,256], index: 0, kind: input, shape index: {}]
  %s1 = inlined_call_operand.vmem [shape: bf16[8,36], index: 1, kind: input, shape index: {}]
  %s2 = inlined_call_operand.vmem [shape: f32[2,8,256], index: 2, kind: output, shape index: {}]
  %s3 = sld [smem:[#allocation0]]
  $region41: #{conv2d_forward.1} parent=0
    _
  %s5 = ssub.s32 1, %s3
  %s6 = scalar_select 0, %s5, %s3
  loop: start=0, step=1, limit=4
  $region2: #{conv2d_forward.1} parent=0 // loop_pre_header
    _
  $region3: #{conv2d_forward.1} parent=0 // loop_header
    %s8 = sphi 0, %s12
    %p9 = scmp.ge.s32.totalorder %s8, 4
    %s15 = sphi 0, %s27
    %s16 = sphi 0, %s23
    %s17 = sphi 0, %s15
    %s18 = sphi 0, %s16
    %s19 = sphi 0, %s17
    %s20 = sphi 0, %s18
    %s32 = sphi 0, %s34
    %s35 = sphi 0, %s32
    %s36 = sphi 0, %s35
    %s52 = sphi 0, %s36
    %s56 = sphi 0, %s56
    %s58 = sphi 0, %s56
    %s59 = sphi 0, %s58
    %s73 = sphi 0, %s59
    %s81 = sphi 0, %s83
    %s84 = sphi 0, %s81
    %s85 = sphi 0, %s84
    %s101 = sphi 0, %s85
  $region4: #{conv2d_forward.1} parent=0 // loop_header_branch
    %11 = sbr.rel (%p9) target = $region8
  $region5: #{conv2d_forward.1} parent=0 // loop_body
    %s13 = ssub.s32 %s8, 1
    %s14 = ssub.s32 %s8, 2
    %s21 = sadd.s32 1, %s16
    %p22 = scmp.ge.s32.totalorder %s21, 1
    %s23 = scalar_select %p22, 0, %s21
    %s24 = sadd.s32 1, %s15
    %s25 = scalar_select %p22, %s24, %s15
    %p26 = scmp.ge.s32.totalorder %s25, 2
    %s27 = scalar_select %p26, 0, %s25
    %s28 = ssub.s32 %s15, %s27
    %s29 = ssub.s32 %s16, %s23
    %s30 = sor.u32 %s28, %s29
    %p31 = scmp.eq.s32.totalorder %s30, 0
    %s33 = sadd.s32 %s32, 1
    %s34 = scalar_select %p31, %s32, %s33
    %p37 = pneg %p31
    %p38 = scmp.eq.s32.totalorder %s8, 1
    %p39 = por %p37, %p38
    %p40 = scmp.ne.s32.totalorder %s32, %s35
    %p41 = scmp.eq.s32.totalorder %s8, 0
    %p42 = por %p40, %p41
    %p43 = scmp.ne.s32.totalorder %s32, %s35
    %p44 = scmp.eq.s32.totalorder %s13, 1
    %p45 = por %p43, %p44
    %p46 = scmp.ne.s32.totalorder %s35, %s36
    %p47 = scmp.eq.s32.totalorder %s13, 0
    %p48 = por %p46, %p47
    %p49 = scmp.ne.s32.totalorder %s35, %s36
    %p50 = scmp.eq.s32.totalorder %s14, 1
    %p51 = por %p49, %p50
    %p53 = scmp.ne.s32.totalorder %s36, %s52
    %p54 = scmp.eq.s32.totalorder %s14, 0
    %p55 = por %p53, %p54
    %s57 = sadd.s32 %s56, 1
    %p60 = scmp.eq.s32.totalorder %s8, 1
    %p61 = scmp.ne.s32.totalorder %s56, %s58
    %p62 = scmp.eq.s32.totalorder %s8, 0
    %p63 = por %p61, %p62
    %p64 = scmp.ne.s32.totalorder %s56, %s58
    %p65 = scmp.eq.s32.totalorder %s13, 1
    %p66 = por %p64, %p65
    %p67 = scmp.ne.s32.totalorder %s58, %s59
    %p68 = scmp.eq.s32.totalorder %s13, 0
    %p69 = por %p67, %p68
    %p70 = scmp.ne.s32.totalorder %s58, %s59
    %p71 = scmp.eq.s32.totalorder %s14, 1
    %p72 = por %p70, %p71
    %p74 = scmp.ne.s32.totalorder %s59, %s73
    %p75 = scmp.eq.s32.totalorder %s14, 0
    %p76 = por %p74, %p75
    %s77 = ssub.s32 %s15, %s27
    %s78 = ssub.s32 %s16, %s23
    %s79 = sor.u32 %s77, %s78
    %p80 = scmp.eq.s32.totalorder %s79, 0
    %s82 = sadd.s32 %s81, 1
    %s83 = scalar_select %p80, %s81, %s82
    %p86 = pneg %p80
    %p87 = scmp.eq.s32.totalorder %s8, 1
    %p88 = por %p86, %p87
    %p89 = scmp.ne.s32.totalorder %s81, %s84
    %p90 = scmp.eq.s32.totalorder %s8, 0
    %p91 = por %p89, %p90
    %p92 = scmp.ne.s32.totalorder %s81, %s84
    %p93 = scmp.eq.s32.totalorder %s13, 1
    %p94 = por %p92, %p93
    %p95 = scmp.ne.s32.totalorder %s84, %s85
    %p96 = scmp.eq.s32.totalorder %s13, 0
    %p97 = por %p95, %p96
    %p98 = scmp.ne.s32.totalorder %s84, %s85
    %p99 = scmp.eq.s32.totalorder %s14, 1
    %p100 = por %p98, %p99
    %p102 = scmp.ne.s32.totalorder %s85, %s101
    %p103 = scmp.eq.s32.totalorder %s14, 0
    %p104 = por %p102, %p103
    %p105 = scmp.le.s32.totalorder 1, %s8
    %p106 = scmp.lt.s32.totalorder %s8, 3
    %p107 = pnand %p105, %p106
    %p108 = pneg %p107
    // Predicated region
    $region9: #{conv2d_forward.1} parent=5 // pred_check
      _
    $region10: #{conv2d_forward.1} parent=5 // pred_check_branch
      %110 = sbr.rel (%p107) target = $region12
    $region11: #{conv2d_forward.1} parent=5 // pred_region
      %s111 = ssub.s32 %s8, 1
      // Predicated region
      $region13: #{conv2d_forward.1} parent=11 // pred_check
        %p112 = pneg %p69
      $region14: #{conv2d_forward.1} parent=11 // pred_check_branch
        %114 = sbr.rel (%p112) target = $region16
      $region15: #{conv2d_forward.1} parent=11 // pred_region
        _
      $region16: #{conv2d_forward.1} parent=11 // pred_fallthru
        _
    $region12: #{conv2d_forward.1} parent=5 // pred_fallthru
      _
    %p115 = scmp.lt.s32.totalorder %s8, 2
    // Predicated region
    $region17: #{conv2d_forward.1} parent=5 // pred_check
      %p116 = pneg %p115
    $region18: #{conv2d_forward.1} parent=5 // pred_check_branch
      %118 = sbr.rel (%p116) target = $region20
    $region19: #{conv2d_forward.1} parent=5 // pred_region
      // Predicated region
      $region21: #{conv2d_forward.1} parent=19 // pred_check
        %p119 = pneg %p42
      $region22: #{conv2d_forward.1} parent=19 // pred_check_branch
        %121 = sbr.rel (%p119) target = $region24
      $region23: #{conv2d_forward.1} parent=19 // pred_region
        %s122 = smul.u32 2, %s16
        %p123 = scmp.lt.s32.totalorder %s15, 1
        %s124 = scalar_select %p123, %s15, 1
        %p125 = scmp.lt.s32.totalorder %s122, 1
        %s126 = scalar_select %p125, %s122, 1
        %s127 = smul.addr %s124, 10
        %s128 = sadd.s32 %s126, %s127
        %s129 = smul.addr %s128, 4
        %s130 = scalar_lea.vmem %s0, %s129
        %s131 = smul.u32 2, %s16
      $region24: #{conv2d_forward.1} parent=19 // pred_fallthru
        _
    $region20: #{conv2d_forward.1} parent=5 // pred_fallthru
      _
    %p132 = scmp.le.s32.totalorder 1, %s8
    %p133 = scmp.lt.s32.totalorder %s8, 3
    %p134 = pnand %p132, %p133
    %p135 = pneg %p134
    // Predicated region
    $region25: #{conv2d_forward.1} parent=5 // pred_check
      _
    $region26: #{conv2d_forward.1} parent=5 // pred_check_branch
      %137 = sbr.rel (%p134) target = $region28
    $region27: #{conv2d_forward.1} parent=5 // pred_region
      %s138 = ssub.s32 %s8, 1
      %s139 = smul.u32 2, %s18
      %p140 = scmp.lt.s32.totalorder %s17, 1
      %s141 = scalar_select %p140, %s17, 1
      %p142 = scmp.lt.s32.totalorder %s139, 1
      %s143 = scalar_select %p142, %s139, 1
      %s144 = smul.addr %s141, 10
      %s145 = sadd.s32 %s143, %s144
      %s146 = smul.addr %s145, 4
      %s147 = scalar_lea.vmem %s0, %s146
      %p148 = pneg %p48
      %p149 = pneg %p45
      %p150 = pneg %p69
      %p151 = pneg %p66
      %p152 = pneg %p97
      %p153 = pneg %p94
      %s154 = smul.u32 2, %s18
      %p155 = scmp.lt.s32.totalorder %s17, 1
      %s156 = scalar_select %p155, %s17, 1
      %p157 = scmp.lt.s32.totalorder %s154, 1
      %s158 = scalar_select %p157, %s154, 1
      %s159 = smul.addr %s156, 2
      %s160 = sadd.s32 %s158, %s159
      %s161 = smul.addr %s160, 8
      %s162 = scalar_lea.vmem %s2, %s161
      %s163 = smul.u32 2, %s18
      %p164 = scmp.lt.s32.totalorder %s17, 1
      %s165 = scalar_select %p164, %s17, 1
      %p166 = scmp.lt.s32.totalorder %s163, 1
      %s167 = scalar_select %p166, %s163, 1
      %s168 = smul.addr %s165, 10
      %s169 = sadd.s32 %s167, %s168
      %s170 = smul.addr %s169, 4
      %s171 = scalar_lea.vmem %s0, %s170
      %s172 = smul.u32 2, %s18
      %s173 = smul.u32 2, %s18
      %p174 = scmp.lt.s32.totalorder %s17, 1
      %s175 = scalar_select %p174, %s17, 1
      %p176 = scmp.lt.s32.totalorder %s173, 1
      %s177 = scalar_select %p176, %s173, 1
      %s178 = smul.addr %s175, 2
      %s179 = sadd.s32 %s177, %s178
      %s180 = smul.addr %s179, 8
      %s181 = scalar_lea.vmem %s2, %s180
      %s182 = smul.u32 2, %s18
      %v184 = vld [vmem:[%s1] sm:$0xf]
      %v185 = vld [vmem:[%s171] sm:$0xff]
      %v186 = vld [vmem:[%s171 + $0x8] sm:$0xff]
      %v187 = vld [vmem:[%s171 + $0x10] sm:$0xff]
      %v188 = vld [vmem:[%s171 + $0x18] sm:$0xff]
      %v189 = vld [vmem:[%s171 + $0x20] sm:$0x33]
      %v195 = vunpack.c.l.b16 %v185
      %v196 = vunpack.c.h.b16 %v185
      %v197 = vunpack.c.l.b16 %v186
      %v198 = vunpack.c.h.b16 %v186
      %v199 = vunpack.c.l.b16 %v187
      %v200 = vunpack.c.h.b16 %v187
      %v201 = vunpack.c.l.b16 %v188
      %v202 = vunpack.c.h.b16 %v188
      %v203 = vunpack.c.l.b16 %v189
      %v204 = vunpack.c.h.b16 %v189
      %v205 = vpack.c.b16 %v197, %v195
      %v206 = vpack.c.b16 %v198, %v196
      %v207 = vpack.c.b16 %v201, %v199
      %v208 = vpack.c.b16 %v202, %v200
      %v209 = vpack.c.b16 %v203, %v203
      %v210 = vpack.c.b16 %v204, %v204
      %vm215 = vcmask 293888
      %v217 = vsel %vm215, %v184, 0
      %vm219 = vcmask 1041408
      %v221 = vsel %vm219, %v209, 0
      %v224 = vsel %vm219, %v210, 0
      %226 = vmatpush.bf16.msra.mxu0 0
      %227 = vmatpush.bf16.msra.mxu0 0
      %228 = vmatpush.bf16.msra.mxu0 0
      %229 = vmatpush.bf16.msra.mxu0 0
      %230 = vmatpush.bf16.msra.mxu0 0
      %231 = vmatpush.bf16.msra.mxu0 %v221
      %232 = vmatpush.bf16.msra.mxu0 %v207
      %233 = vmatpush.bf16.msra.mxu0 %v205
      %234 = vmatmul.bf16.gmra.mxu0 %v217
      %v235 = vpop.f32.mrf.mxu0
      %v236 = vadd.f32 0.0, %v235
      %v237 = vpop.f32.mrf.mxu0
      %238 = vdwg.mxu0
      %239 = vmatpush.bf16.msra.mxu0 0
      %240 = vmatpush.bf16.msra.mxu0 0
      %241 = vmatpush.bf16.msra.mxu0 0
      %242 = vmatpush.bf16.msra.mxu0 0
      %243 = vmatpush.bf16.msra.mxu0 0
      %244 = vmatpush.bf16.msra.mxu0 %v224
      %245 = vmatpush.bf16.msra.mxu0 %v208
      %246 = vmatpush.bf16.msra.mxu0 %v206
      %247 = vmatmul.bf16.gmra.mxu0 %v217
      %v248 = vpop.f32.mrf.mxu0
      %v249 = vadd.f32 0.0, %v248
      %v250 = vpop.f32.mrf.mxu0
      %251 = vdwg.mxu0
      %252 = vst [vmem:[%s181] sm:$0xff] %v236
      %253 = vst [vmem:[%s181 + $0x8] sm:$0xff] %v249
      %s254 = smul.u32 2, %s18
      %p255 = scmp.lt.s32.totalorder %s17, 1
      %s256 = scalar_select %p255, %s17, 1
      %p257 = scmp.lt.s32.totalorder %s254, 1
      %s258 = scalar_select %p257, %s254, 1
      %s259 = smul.addr %s256, 2
      %s260 = sadd.s32 %s258, %s259
      %s261 = smul.addr %s260, 8
      %s262 = scalar_lea.vmem %s2, %s261
      // Predicated region
      $region29: #{conv2d_forward.1} parent=27 // pred_check
        %p263 = pneg %p94
      $region30: #{conv2d_forward.1} parent=27 // pred_check_branch
        %265 = sbr.rel (%p263) target = $region32
      $region31: #{conv2d_forward.1} parent=27 // pred_region
        %s266 = smul.u32 2, %s18
      $region32: #{conv2d_forward.1} parent=27 // pred_fallthru
        _
    $region28: #{conv2d_forward.1} parent=5 // pred_fallthru
      _
    %p267 = scmp.le.s32.totalorder 2, %s8
    // Predicated region
    $region33: #{conv2d_forward.1} parent=5 // pred_check
      %p268 = pneg %p267
    $region34: #{conv2d_forward.1} parent=5 // pred_check_branch
      %270 = sbr.rel (%p268) target = $region36
    $region35: #{conv2d_forward.1} parent=5 // pred_region
      %s271 = ssub.s32 %s8, 2
      // Predicated region
      $region37: #{conv2d_forward.1} parent=35 // pred_check
        %p272 = pneg %p100
      $region38: #{conv2d_forward.1} parent=35 // pred_check_branch
        %274 = sbr.rel (%p272) target = $region40
      $region39: #{conv2d_forward.1} parent=35 // pred_region
        %s275 = smul.u32 2, %s20
        %p276 = scmp.lt.s32.totalorder %s19, 1
        %s277 = scalar_select %p276, %s19, 1
        %p278 = scmp.lt.s32.totalorder %s275, 1
        %s279 = scalar_select %p278, %s275, 1
        %s280 = smul.addr %s277, 2
        %s281 = sadd.s32 %s279, %s280
        %s282 = smul.addr %s281, 8
        %s283 = scalar_lea.vmem %s2, %s282
      $region40: #{conv2d_forward.1} parent=35 // pred_fallthru
        _
    $region36: #{conv2d_forward.1} parent=5 // pred_fallthru
      _
  $region6: #{conv2d_forward.1} parent=0 // loop_footer
    %s12 = sadd.s32 1, %s8
  $region7: #{conv2d_forward.1} parent=0 // loop_footer_branch
    %7 = sbr.rel target = $region3
  $region8: #{conv2d_forward.1} parent=0 // loop_exit
    _

</llo_original>
